<compile_context>
chip_gen: v5e
topology: v5e:2x2
jax: 0.10.0
libtpu: 0.0.40
codegen_flags: <defaults>
</compile_context>

<pallas_src>
import functools
from math import sqrt

import jax
import jax.numpy as jnp
from jax.experimental import pallas as pl
from jax.experimental.pallas import tpu as pltpu


# --------------------------- kernel 1: QKV projection + RoPE ---------------------------
def qkv_rope_kernel(x_ref, wq_ref, wk_ref, wv_ref, cos_ref, sin_ref,
                    q_ref, k_ref, v_ref, *, n_heads, n_kv_heads, head_dim):
    hd2 = head_dim // 2
    scale = 1.0 / sqrt(head_dim)

    x = x_ref[0].astype(jnp.bfloat16)                                    # (S, D)

    # bf16 MXU GEMMs with f32 accumulation. 1/sqrt(hd) folded into q (exact: RoPE is a rotation).
    xq = jnp.dot(x, wq_ref[...], preferred_element_type=jnp.float32) * scale
    xk = jnp.dot(x, wk_ref[...], preferred_element_type=jnp.float32)
    xv = jnp.dot(x, wv_ref[...], preferred_element_type=jnp.float32)

    # Weight columns pre-permuted: [all heads' even rotary comps | all heads' odd comps].
    qE, qO = xq[:, :n_heads * hd2], xq[:, n_heads * hd2:]
    kE, kO = xk[:, :n_kv_heads * hd2], xk[:, n_kv_heads * hd2:]

    # cos/sin passed once as (S, hd2); broadcast across heads in-kernel (hoisted, done once).
    cos = cos_ref[...]
    sin = sin_ref[...]
    cq, sq = jnp.tile(cos, (1, n_heads)), jnp.tile(sin, (1, n_heads))
    ck, sk = jnp.tile(cos, (1, n_kv_heads)), jnp.tile(sin, (1, n_kv_heads))

    # RoPE in f32: new_even = e*cos - o*sin ; new_odd = e*sin + o*cos
    qE_n = qE * cq - qO * sq
    qO_n = qE * sq + qO * cq
    kE_n = kE * ck - kO * sk
    kO_n = kE * sk + kO * ck

    # Head-major bf16 slabs; per-head layout [rot_evens | rot_odds] so the attention kernel can
    # contract over head_dim with a single dot (no concatenates anywhere).
    for h in range(n_heads):
        q_ref[0, h, :, :hd2] = qE_n[:, h * hd2:(h + 1) * hd2].astype(q_ref.dtype)
        q_ref[0, h, :, hd2:] = qO_n[:, h * hd2:(h + 1) * hd2].astype(q_ref.dtype)
    for h in range(n_kv_heads):
        k_ref[0, h, :, :hd2] = kE_n[:, h * hd2:(h + 1) * hd2].astype(k_ref.dtype)
        k_ref[0, h, :, hd2:] = kO_n[:, h * hd2:(h + 1) * hd2].astype(k_ref.dtype)
        v_ref[0, h, :, :] = xv[:, h * head_dim:(h + 1) * head_dim].astype(v_ref.dtype)


# --------------------------- kernel 2: flash-style attention ---------------------------
def flash_attn_kernel(q_ref, k_ref, v_ref, o_ref, m_sc, l_sc, acc_sc, *, tq, tk):
    qb = pl.program_id(2)
    kb = pl.program_id(3)

    @pl.when(kb == 0)
    def _():
        m_sc[...] = jnp.full_like(m_sc[...], -jnp.inf)
        l_sc[...] = jnp.zeros_like(l_sc[...])
        acc_sc[...] = jnp.zeros_like(acc_sc[...])

    q = q_ref[0, 0]                                                      # (tq, hd) bf16, pre-scaled
    k = k_ref[0, 0]                                                      # (tk, hd) bf16
    v = v_ref[0, 0]                                                      # (tk, hd) bf16

    s = jax.lax.dot_general(q, k, (((1,), (1,)), ((), ())),
                            preferred_element_type=jnp.float32)          # (tq, tk) f32

    # Causal mask generated in-kernel (matches reference `scores + mask * -1e9`).
    row = qb * tq + jax.lax.broadcasted_iota(jnp.int32, (tq, tk), 0)
    col = kb * tk + jax.lax.broadcasted_iota(jnp.int32, (tq, tk), 1)
    s = s + jnp.where(col > row, jnp.float32(-1e9), jnp.float32(0.0))

    # Online softmax (f32).
    m_prev = m_sc[...]
    m_new = jnp.maximum(m_prev, jnp.max(s, axis=-1, keepdims=True))
    alpha = jnp.exp(m_prev - m_new)
    p = jnp.exp(s - m_new)
    l_sc[...] = alpha * l_sc[...] + jnp.sum(p, axis=-1, keepdims=True)
    acc_sc[...] = alpha * acc_sc[...] + jnp.dot(p.astype(v.dtype), v,
                                                preferred_element_type=jnp.float32)
    m_sc[...] = m_new

    @pl.when(kb == pl.num_programs(3) - 1)
    def _():
        o_ref[0, 0] = (acc_sc[...] *
                       pl.reciprocal(l_sc[...], approx=True)).astype(o_ref.dtype)


# --------------------------- kernel 3: output projection (K-tiled over heads) ----------
def out_proj_kernel(a_ref, wo_ref, o_ref, acc_sc):
    h = pl.program_id(1)

    @pl.when(h == 0)
    def _():
        acc_sc[...] = jnp.zeros_like(acc_sc[...])

    acc_sc[...] += jnp.dot(a_ref[0, 0], wo_ref[0],
                           preferred_element_type=jnp.float32)

    @pl.when(h == pl.num_programs(1) - 1)
    def _():
        o_ref[0] = acc_sc[...].astype(o_ref.dtype)


# --------------------------------- host-side wrapper -----------------------------------
def _deinterleave_perm(nh, hd):
    ev = [h * hd + 2 * i for h in range(nh) for i in range(hd // 2)]
    od = [h * hd + 2 * i + 1 for h in range(nh) for i in range(hd // 2)]
    return jnp.array(ev + od, dtype=jnp.int32)


def attention_pallas(x, wq, wk, wv, wo, cos, sin, n_heads, n_kv_heads, head_dim):
    """Forward pass of the Attention module (causal mask, start_pos = 0, no KV cache)."""
    B, S, D = x.shape
    hd2 = head_dim // 2
    n_rep = n_heads // n_kv_heads
    Hd = n_heads * head_dim
    KVd = n_kv_heads * head_dim

    # Sequence tiling for the flash kernel (single block at demo size, 128 for larger S).
    tq = S if S <= 128 else 128
    tk = S if S <= 128 else 128
    assert S % tq == 0 and S % tk == 0
    nq, nk = S // tq, S // tk

    # One-time host-side weight prep: per-head deinterleave of Q/K columns + bf16 cast.
    wq_p = wq[:, _deinterleave_perm(n_heads, head_dim)].astype(jnp.bfloat16)
    wk_p = wk[:, _deinterleave_perm(n_kv_heads, head_dim)].astype(jnp.bfloat16)
    wv_b = wv.astype(jnp.bfloat16)
    wo_b = wo.reshape(n_heads, head_dim, D).astype(jnp.bfloat16)   # per-head row blocks

    # ---- 1) QKV projection + RoPE -> head-major bf16 q/k/v ----
    # TODO(synk): for large `dim`, keep wq/wk/wv HBM-resident (memory_space=pl.ANY) and K-tile
    # the projection GEMMs instead of holding full weights in VMEM (v7x 64 MiB budget).
    q_hm, k_hm, v_hm = pl.pallas_call(
        functools.partial(qkv_rope_kernel, n_heads=n_heads,
                          n_kv_heads=n_kv_heads, head_dim=head_dim),
        out_shape=(jax.ShapeDtypeStruct((B, n_heads, S, head_dim), jnp.bfloat16),
                   jax.ShapeDtypeStruct((B, n_kv_heads, S, head_dim), jnp.bfloat16),
                   jax.ShapeDtypeStruct((B, n_kv_heads, S, head_dim), jnp.bfloat16)),
        grid_spec=pltpu.PrefetchScalarGridSpec(
            num_scalar_prefetch=0,
            grid=(B,),
            in_specs=[
                pl.BlockSpec((1, S, D), lambda b: (b, 0, 0)),        # x
                pl.BlockSpec((D, Hd), lambda b: (0, 0)),             # Wq (deinterleaved cols)
                pl.BlockSpec((D, KVd), lambda b: (0, 0)),            # Wk (deinterleaved cols)
                pl.BlockSpec((D, KVd), lambda b: (0, 0)),            # Wv
                pl.BlockSpec((S, hd2), lambda b: (0, 0)),            # cos (S, hd2)
                pl.BlockSpec((S, hd2), lambda b: (0, 0)),            # sin (S, hd2)
            ],
            out_specs=[
                pl.BlockSpec((1, n_heads, S, head_dim), lambda b: (b, 0, 0, 0)),
                pl.BlockSpec((1, n_kv_heads, S, head_dim), lambda b: (b, 0, 0, 0)),
                pl.BlockSpec((1, n_kv_heads, S, head_dim), lambda b: (b, 0, 0, 0)),
            ],
        ),
        compiler_params=pltpu.CompilerParams(dimension_semantics=("parallel",)),
    )(x, wq_p, wk_p, wv_b, cos, sin)

    # ---- 2) flash attention over (batch, head, q block, kv block) ----
    attn_hm = pl.pallas_call(
        functools.partial(flash_attn_kernel, tq=tq, tk=tk),
        out_shape=jax.ShapeDtypeStruct((B, n_heads, S, head_dim), jnp.bfloat16),
        grid_spec=pltpu.PrefetchScalarGridSpec(
            num_scalar_prefetch=0,
            grid=(B, n_heads, nq, nk),
            in_specs=[
                pl.BlockSpec((1, 1, tq, head_dim), lambda b, h, i, j: (b, h, i, 0)),
                # repeat_kv for free via the index_map (grouped-query attention):
                pl.BlockSpec((1, 1, tk, head_dim), lambda b, h, i, j: (b, h // n_rep, j, 0)),
                pl.BlockSpec((1, 1, tk, head_dim), lambda b, h, i, j: (b, h // n_rep, j, 0)),
            ],
            out_specs=pl.BlockSpec((1, 1, tq, head_dim), lambda b, h, i, j: (b, h, i, 0)),
            scratch_shapes=[
                pltpu.VMEM((tq, 1), jnp.float32),          # running max
                pltpu.VMEM((tq, 1), jnp.float32),          # running sum
                pltpu.VMEM((tq, head_dim), jnp.float32),   # output accumulator
            ],
        ),
        compiler_params=pltpu.CompilerParams(
            dimension_semantics=("parallel", "parallel", "parallel", "arbitrary")),
    )(q_hm, k_hm, v_hm)

    # ---- 3) output projection, reduced over heads (no concatenate of per-head outputs) ----
    out = pl.pallas_call(
        out_proj_kernel,
        out_shape=jax.ShapeDtypeStruct((B, S, D), x.dtype),
        grid_spec=pltpu.PrefetchScalarGridSpec(
            num_scalar_prefetch=0,
            grid=(B, n_heads),
            in_specs=[
                pl.BlockSpec((1, 1, S, head_dim), lambda b, h: (b, h, 0, 0)),
                pl.BlockSpec((1, head_dim, D), lambda b, h: (h, 0, 0)),
            ],
            out_specs=pl.BlockSpec((1, S, D), lambda b, h: (b, 0, 0)),
            scratch_shapes=[pltpu.VMEM((S, D), jnp.float32)],
        ),
        compiler_params=pltpu.CompilerParams(
            dimension_semantics=("parallel", "arbitrary")),
    )(attn_hm, wo_b)

    return out


# ---------------- pure-JAX f32 reference (exact torch semantics) ----------------
def reference_attention(x, wq, wk, wv, wo, cos, sin, mask,
                        n_heads, n_kv_heads, head_dim):
    B, S, D = x.shape
    n_rep = n_heads // n_kv_heads
    xq = (x @ wq).reshape(B, S, n_heads, head_dim)
    xk = (x @ wk).reshape(B, S, n_kv_heads, head_dim)
    xv = (x @ wv).reshape(B, S, n_kv_heads, head_dim)

    def rope(t):
        tr = t.reshape(*t.shape[:-1], head_dim // 2, 2)
        e, o = tr[..., 0], tr[..., 1]
        c = cos[None, :, None, :]
        s = sin[None, :, None, :]
        return jnp.stack([e * c - o * s, e * s + o * c], axis=-1).reshape(t.shape)

    xq, xk = rope(xq), rope(xk)
    keys = jnp.repeat(xk, n_rep, axis=2)       # repeat_kv
    values = jnp.repeat(xv, n_rep, axis=2)
    q = jnp.transpose(xq, (0, 2, 1, 3))
    k = jnp.transpose(keys, (0, 2, 1, 3))
    v = jnp.transpose(values, (0, 2, 1, 3))
    scores = jnp.einsum('bhqd,bhkd->bhqk', q, k) / jnp.sqrt(jnp.float32(head_dim))
    scores = scores + mask[None, None] * (-1e9)
    probs = jax.nn.softmax(scores.astype(jnp.float32), axis=-1)
    out = jnp.einsum('bhqk,bhkd->bhqd', probs, v)
    out = jnp.transpose(out, (0, 2, 1, 3)).reshape(B, S, n_heads * head_dim)
    return out @ wo


if __name__ == "__main__":
    # config: dim=32, n_heads=4, n_kv_heads=2 -> head_dim=8, n_rep=2
    B, S, D = 2, 8, 32
    n_heads, n_kv_heads = 4, 2
    head_dim = D // n_heads
    hd2 = head_dim // 2

    key = jax.random.PRNGKey(0)
    kx, kq, kk, kvk, ko = jax.random.split(key, 5)

    def xavier(k, fan_in, fan_out):
        bound = sqrt(6.0 / (fan_in + fan_out))
        return jax.random.uniform(k, (fan_in, fan_out), jnp.float32, -bound, bound)

    wq = xavier(kq, D, n_heads * head_dim)
    wk = xavier(kk, D, n_kv_heads * head_dim)
    wv = xavier(kvk, D, n_kv_heads * head_dim)
    wo = xavier(ko, n_heads * head_dim, D)
    x = jax.random.normal(kx, (B, S, D), jnp.float32)

    # rotary tables (freqs_cis -> cos/sin), theta = 10000, start_pos = 0
    freqs = 1.0 / (10000.0 ** (jnp.arange(0, hd2, dtype=jnp.float32) * 2.0 / head_dim))
    t = jnp.arange(S, dtype=jnp.float32)
    angles = jnp.outer(t, freqs)                 # (S, hd2)
    cos, sin = jnp.cos(angles), jnp.sin(angles)

    out = attention_pallas(x, wq, wk, wv, wo, cos, sin, n_heads, n_kv_heads, head_dim)
    out = jax.block_until_ready(out)

    # causal mask (1 where masked) for the f32 reference; the kernel builds it in-kernel.
    # TODO(synk): an arbitrary user-supplied `mask` would require re-adding it as a kernel input.
    mask = jnp.triu(jnp.ones((S, S), jnp.float32), k=1)
    ref = reference_attention(x, wq, wk, wv, wo, cos, sin, mask,
                              n_heads, n_kv_heads, head_dim)
    err = float(jnp.max(jnp.abs(out - ref)))
    # bf16 MXU inputs + approx reciprocal -> loosened tolerance vs f32 reference.
    assert jnp.allclose(out, ref, atol=5e-2, rtol=5e-2), err
    print("KERNEL_OK")
</pallas_src>

<mosaic_0001>
module attributes {stable_mosaic.version = 11 : i64} {
  func.func @qkv_rope_kernel(%arg0: i32, %arg1: memref<1x8x32xf32, #tpu.memory_space<vmem>>, %arg2: memref<32x32xbf16, #tpu.memory_space<vmem>>, %arg3: memref<32x16xbf16, #tpu.memory_space<vmem>>, %arg4: memref<32x16xbf16, #tpu.memory_space<vmem>>, %arg5: memref<8x4xf32, #tpu.memory_space<vmem>>, %arg6: memref<8x4xf32, #tpu.memory_space<vmem>>, %arg7: memref<1x4x8x8xbf16, #tpu.memory_space<vmem>>, %arg8: memref<1x2x8x8xbf16, #tpu.memory_space<vmem>>, %arg9: memref<1x2x8x8xbf16, #tpu.memory_space<vmem>>) attributes {dimension_semantics = [#tpu.dimension_semantics<parallel>], iteration_bounds = array<i64: 2>, scalar_prefetch = 0 : i64, scratch_operands = 0 : i64, tpu.core_type = #tpu.core_type<tc>, window_params = [{transform_indices = @transform_0, window_bounds = array<i64: 1, 8, 32>}, {pipeline_mode = #tpu.pipeline_mode<synchronous>, transform_indices = @transform_1, window_bounds = array<i64: 32, 32>}, {pipeline_mode = #tpu.pipeline_mode<synchronous>, transform_indices = @transform_2, window_bounds = array<i64: 32, 16>}, {pipeline_mode = #tpu.pipeline_mode<synchronous>, transform_indices = @transform_3, window_bounds = array<i64: 32, 16>}, {pipeline_mode = #tpu.pipeline_mode<synchronous>, transform_indices = @transform_4, window_bounds = array<i64: 8, 4>}, {pipeline_mode = #tpu.pipeline_mode<synchronous>, transform_indices = @transform_5, window_bounds = array<i64: 8, 4>}, {transform_indices = @transform_6, window_bounds = array<i64: 1, 4, 8, 8>}, {transform_indices = @transform_7, window_bounds = array<i64: 1, 2, 8, 8>}, {transform_indices = @transform_8, window_bounds = array<i64: 1, 2, 8, 8>}]} {
    %c0 = arith.constant 0 : index
    %c0_0 = arith.constant 0 : index
    %c0_1 = arith.constant 0 : index
    %0 = vector.load %arg1[%c0, %c0_0, %c0_1] : memref<1x8x32xf32, #tpu.memory_space<vmem>>, vector<1x8x32xf32>
    %1 = vector.shape_cast %0 : vector<1x8x32xf32> to vector<8x32xf32>
    %2 = arith.truncf %1 : vector<8x32xf32> to vector<8x32xbf16>
    %c0_2 = arith.constant 0 : index
    %c0_3 = arith.constant 0 : index
    %3 = vector.load %arg2[%c0_2, %c0_3] : memref<32x32xbf16, #tpu.memory_space<vmem>>, vector<32x32xbf16>
    %cst = arith.constant dense<0.000000e+00> : vector<8x32xf32>
    %4 = tpu.matmul %2, %3, %cst {dimension_numbers = #tpu.dot_dimension_numbers<[1], [0], [0], [1], [0, 0, 1, 1], [], []>} : vector<8x32xbf16>, vector<32x32xbf16>, vector<8x32xf32> -> vector<8x32xf32>
    %cst_4 = arith.constant 0.353553385 : f32
    %5 = vector.broadcast %cst_4 : f32 to vector<8x32xf32>
    %6 = arith.mulf %4, %5 : vector<8x32xf32>
    %c0_5 = arith.constant 0 : index
    %c0_6 = arith.constant 0 : index
    %7 = vector.load %arg3[%c0_5, %c0_6] : memref<32x16xbf16, #tpu.memory_space<vmem>>, vector<32x16xbf16>
    %cst_7 = arith.constant dense<0.000000e+00> : vector<8x16xf32>
    %8 = tpu.matmul %2, %7, %cst_7 {dimension_numbers = #tpu.dot_dimension_numbers<[1], [0], [0], [1], [0, 0, 1, 1], [], []>} : vector<8x32xbf16>, vector<32x16xbf16>, vector<8x16xf32> -> vector<8x16xf32>
    %c0_8 = arith.constant 0 : index
    %c0_9 = arith.constant 0 : index
    %9 = vector.load %arg4[%c0_8, %c0_9] : memref<32x16xbf16, #tpu.memory_space<vmem>>, vector<32x16xbf16>
    %cst_10 = arith.constant dense<0.000000e+00> : vector<8x16xf32>
    %10 = tpu.matmul %2, %9, %cst_10 {dimension_numbers = #tpu.dot_dimension_numbers<[1], [0], [0], [1], [0, 0, 1, 1], [], []>} : vector<8x32xbf16>, vector<32x16xbf16>, vector<8x16xf32> -> vector<8x16xf32>
    %11 = vector.extract_strided_slice %6 {offsets = [0, 0], sizes = [8, 16], strides = [1, 1]} : vector<8x32xf32> to vector<8x16xf32>
    %12 = vector.extract_strided_slice %6 {offsets = [0, 16], sizes = [8, 16], strides = [1, 1]} : vector<8x32xf32> to vector<8x16xf32>
    %13 = vector.extract_strided_slice %8 {offsets = [0, 0], sizes = [8, 8], strides = [1, 1]} : vector<8x16xf32> to vector<8x8xf32>
    %14 = vector.extract_strided_slice %8 {offsets = [0, 8], sizes = [8, 8], strides = [1, 1]} : vector<8x16xf32> to vector<8x8xf32>
    %c0_11 = arith.constant 0 : index
    %c0_12 = arith.constant 0 : index
    %15 = vector.load %arg5[%c0_11, %c0_12] : memref<8x4xf32, #tpu.memory_space<vmem>>, vector<8x4xf32>
    %c0_13 = arith.constant 0 : index
    %c0_14 = arith.constant 0 : index
    %16 = vector.load %arg6[%c0_13, %c0_14] : memref<8x4xf32, #tpu.memory_space<vmem>>, vector<8x4xf32>
    %17 = tpu.concatenate %15, %15, %15, %15 in 1 : vector<8x4xf32>, vector<8x4xf32>, vector<8x4xf32>, vector<8x4xf32> -> vector<8x16xf32>
    %18 = tpu.concatenate %16, %16, %16, %16 in 1 : vector<8x4xf32>, vector<8x4xf32>, vector<8x4xf32>, vector<8x4xf32> -> vector<8x16xf32>
    %19 = tpu.concatenate %15, %15 in 1 : vector<8x4xf32>, vector<8x4xf32> -> vector<8x8xf32>
    %20 = tpu.concatenate %16, %16 in 1 : vector<8x4xf32>, vector<8x4xf32> -> vector<8x8xf32>
    %21 = arith.mulf %11, %17 : vector<8x16xf32>
    %22 = arith.mulf %12, %18 : vector<8x16xf32>
    %23 = arith.subf %21, %22 : vector<8x16xf32>
    %24 = arith.mulf %11, %18 : vector<8x16xf32>
    %25 = arith.mulf %12, %17 : vector<8x16xf32>
    %26 = arith.addf %24, %25 : vector<8x16xf32>
    %27 = arith.mulf %13, %19 : vector<8x8xf32>
    %28 = arith.mulf %14, %20 : vector<8x8xf32>
    %29 = arith.subf %27, %28 : vector<8x8xf32>
    %30 = arith.mulf %13, %20 : vector<8x8xf32>
    %31 = arith.mulf %14, %19 : vector<8x8xf32>
    %32 = arith.addf %30, %31 : vector<8x8xf32>
    %33 = vector.extract_strided_slice %23 {offsets = [0, 0], sizes = [8, 4], strides = [1, 1]} : vector<8x16xf32> to vector<8x4xf32>
    %34 = arith.truncf %33 : vector<8x4xf32> to vector<8x4xbf16>
    %c0_15 = arith.constant 0 : index
    %c0_16 = arith.constant 0 : index
    %c0_17 = arith.constant 0 : index
    %c0_18 = arith.constant 0 : index
    %35 = vector.load %arg7[%c0_15, %c0_16, %c0_17, %c0_18] : memref<1x4x8x8xbf16, #tpu.memory_space<vmem>>, vector<1x1x8x4xbf16>
    %36 = vector.shape_cast %35 : vector<1x1x8x4xbf16> to vector<8x4xbf16>
    %37 = vector.shape_cast %34 : vector<8x4xbf16> to vector<1x1x8x4xbf16>
    tpu.vector_store %arg7[%c0_15, %c0_16, %c0_17, %c0_18], %37 {strides = array<i32>} : memref<1x4x8x8xbf16, #tpu.memory_space<vmem>>, vector<1x1x8x4xbf16>,
    %38 = vector.extract_strided_slice %26 {offsets = [0, 0], sizes = [8, 4], strides = [1, 1]} : vector<8x16xf32> to vector<8x4xf32>
    %39 = arith.truncf %38 : vector<8x4xf32> to vector<8x4xbf16>
    %c0_19 = arith.constant 0 : index
    %c0_20 = arith.constant 0 : index
    %c0_21 = arith.constant 0 : index
    %c4 = arith.constant 4 : index
    %40 = vector.load %arg7[%c0_19, %c0_20, %c0_21, %c4] : memref<1x4x8x8xbf16, #tpu.memory_space<vmem>>, vector<1x1x8x4xbf16>
    %41 = vector.shape_cast %40 : vector<1x1x8x4xbf16> to vector<8x4xbf16>
    %42 = vector.shape_cast %39 : vector<8x4xbf16> to vector<1x1x8x4xbf16>
    tpu.vector_store %arg7[%c0_19, %c0_20, %c0_21, %c4], %42 {strides = array<i32>} : memref<1x4x8x8xbf16, #tpu.memory_space<vmem>>, vector<1x1x8x4xbf16>,
    %43 = vector.extract_strided_slice %23 {offsets = [0, 4], sizes = [8, 4], strides = [1, 1]} : vector<8x16xf32> to vector<8x4xf32>
    %44 = arith.truncf %43 : vector<8x4xf32> to vector<8x4xbf16>
    %c0_22 = arith.constant 0 : index
    %c1 = arith.constant 1 : index
    %c0_23 = arith.constant 0 : index
    %c0_24 = arith.constant 0 : index
    %45 = vector.load %arg7[%c0_22, %c1, %c0_23, %c0_24] : memref<1x4x8x8xbf16, #tpu.memory_space<vmem>>, vector<1x1x8x4xbf16>
    %46 = vector.shape_cast %45 : vector<1x1x8x4xbf16> to vector<8x4xbf16>
    %47 = vector.shape_cast %44 : vector<8x4xbf16> to vector<1x1x8x4xbf16>
    tpu.vector_store %arg7[%c0_22, %c1, %c0_23, %c0_24], %47 {strides = array<i32>} : memref<1x4x8x8xbf16, #tpu.memory_space<vmem>>, vector<1x1x8x4xbf16>,
    %48 = vector.extract_strided_slice %26 {offsets = [0, 4], sizes = [8, 4], strides = [1, 1]} : vector<8x16xf32> to vector<8x4xf32>
    %49 = arith.truncf %48 : vector<8x4xf32> to vector<8x4xbf16>
    %c0_25 = arith.constant 0 : index
    %c1_26 = arith.constant 1 : index
    %c0_27 = arith.constant 0 : index
    %c4_28 = arith.constant 4 : index
    %50 = vector.load %arg7[%c0_25, %c1_26, %c0_27, %c4_28] : memref<1x4x8x8xbf16, #tpu.memory_space<vmem>>, vector<1x1x8x4xbf16>
    %51 = vector.shape_cast %50 : vector<1x1x8x4xbf16> to vector<8x4xbf16>
    %52 = vector.shape_cast %49 : vector<8x4xbf16> to vector<1x1x8x4xbf16>
    tpu.vector_store %arg7[%c0_25, %c1_26, %c0_27, %c4_28], %52 {strides = array<i32>} : memref<1x4x8x8xbf16, #tpu.memory_space<vmem>>, vector<1x1x8x4xbf16>,
    %53 = vector.extract_strided_slice %23 {offsets = [0, 8], sizes = [8, 4], strides = [1, 1]} : vector<8x16xf32> to vector<8x4xf32>
    %54 = arith.truncf %53 : vector<8x4xf32> to vector<8x4xbf16>
    %c0_29 = arith.constant 0 : index
    %c2 = arith.constant 2 : index
    %c0_30 = arith.constant 0 : index
    %c0_31 = arith.constant 0 : index
    %55 = vector.load %arg7[%c0_29, %c2, %c0_30, %c0_31] : memref<1x4x8x8xbf16, #tpu.memory_space<vmem>>, vector<1x1x8x4xbf16>
    %56 = vector.shape_cast %55 : vector<1x1x8x4xbf16> to vector<8x4xbf16>
    %57 = vector.shape_cast %54 : vector<8x4xbf16> to vector<1x1x8x4xbf16>
    tpu.vector_store %arg7[%c0_29, %c2, %c0_30, %c0_31], %57 {strides = array<i32>} : memref<1x4x8x8xbf16, #tpu.memory_space<vmem>>, vector<1x1x8x4xbf16>,
    %58 = vector.extract_strided_slice %26 {offsets = [0, 8], sizes = [8, 4], strides = [1, 1]} : vector<8x16xf32> to vector<8x4xf32>
    %59 = arith.truncf %58 : vector<8x4xf32> to vector<8x4xbf16>
    %c0_32 = arith.constant 0 : index
    %c2_33 = arith.constant 2 : index
    %c0_34 = arith.constant 0 : index
    %c4_35 = arith.constant 4 : index
    %60 = vector.load %arg7[%c0_32, %c2_33, %c0_34, %c4_35] : memref<1x4x8x8xbf16, #tpu.memory_space<vmem>>, vector<1x1x8x4xbf16>
    %61 = vector.shape_cast %60 : vector<1x1x8x4xbf16> to vector<8x4xbf16>
    %62 = vector.shape_cast %59 : vector<8x4xbf16> to vector<1x1x8x4xbf16>
    tpu.vector_store %arg7[%c0_32, %c2_33, %c0_34, %c4_35], %62 {strides = array<i32>} : memref<1x4x8x8xbf16, #tpu.memory_space<vmem>>, vector<1x1x8x4xbf16>,
    %63 = vector.extract_strided_slice %23 {offsets = [0, 12], sizes = [8, 4], strides = [1, 1]} : vector<8x16xf32> to vector<8x4xf32>
    %64 = arith.truncf %63 : vector<8x4xf32> to vector<8x4xbf16>
    %c0_36 = arith.constant 0 : index
    %c3 = arith.constant 3 : index
    %c0_37 = arith.constant 0 : index
    %c0_38 = arith.constant 0 : index
    %65 = vector.load %arg7[%c0_36, %c3, %c0_37, %c0_38] : memref<1x4x8x8xbf16, #tpu.memory_space<vmem>>, vector<1x1x8x4xbf16>
    %66 = vector.shape_cast %65 : vector<1x1x8x4xbf16> to vector<8x4xbf16>
    %67 = vector.shape_cast %64 : vector<8x4xbf16> to vector<1x1x8x4xbf16>
    tpu.vector_store %arg7[%c0_36, %c3, %c0_37, %c0_38], %67 {strides = array<i32>} : memref<1x4x8x8xbf16, #tpu.memory_space<vmem>>, vector<1x1x8x4xbf16>,
    %68 = vector.extract_strided_slice %26 {offsets = [0, 12], sizes = [8, 4], strides = [1, 1]} : vector<8x16xf32> to vector<8x4xf32>
    %69 = arith.truncf %68 : vector<8x4xf32> to vector<8x4xbf16>
    %c0_39 = arith.constant 0 : index
    %c3_40 = arith.constant 3 : index
    %c0_41 = arith.constant 0 : index
    %c4_42 = arith.constant 4 : index
    %70 = vector.load %arg7[%c0_39, %c3_40, %c0_41, %c4_42] : memref<1x4x8x8xbf16, #tpu.memory_space<vmem>>, vector<1x1x8x4xbf16>
    %71 = vector.shape_cast %70 : vector<1x1x8x4xbf16> to vector<8x4xbf16>
    %72 = vector.shape_cast %69 : vector<8x4xbf16> to vector<1x1x8x4xbf16>
    tpu.vector_store %arg7[%c0_39, %c3_40, %c0_41, %c4_42], %72 {strides = array<i32>} : memref<1x4x8x8xbf16, #tpu.memory_space<vmem>>, vector<1x1x8x4xbf16>,
    %73 = vector.extract_strided_slice %29 {offsets = [0, 0], sizes = [8, 4], strides = [1, 1]} : vector<8x8xf32> to vector<8x4xf32>
    %74 = arith.truncf %73 : vector<8x4xf32> to vector<8x4xbf16>
    %c0_43 = arith.constant 0 : index
    %c0_44 = arith.constant 0 : index
    %c0_45 = arith.constant 0 : index
    %c0_46 = arith.constant 0 : index
    %75 = vector.load %arg8[%c0_43, %c0_44, %c0_45, %c0_46] : memref<1x2x8x8xbf16, #tpu.memory_space<vmem>>, vector<1x1x8x4xbf16>
    %76 = vector.shape_cast %75 : vector<1x1x8x4xbf16> to vector<8x4xbf16>
    %77 = vector.shape_cast %74 : vector<8x4xbf16> to vector<1x1x8x4xbf16>
    tpu.vector_store %arg8[%c0_43, %c0_44, %c0_45, %c0_46], %77 {strides = array<i32>} : memref<1x2x8x8xbf16, #tpu.memory_space<vmem>>, vector<1x1x8x4xbf16>,
    %78 = vector.extract_strided_slice %32 {offsets = [0, 0], sizes = [8, 4], strides = [1, 1]} : vector<8x8xf32> to vector<8x4xf32>
    %79 = arith.truncf %78 : vector<8x4xf32> to vector<8x4xbf16>
    %c0_47 = arith.constant 0 : index
    %c0_48 = arith.constant 0 : index
    %c0_49 = arith.constant 0 : index
    %c4_50 = arith.constant 4 : index
    %80 = vector.load %arg8[%c0_47, %c0_48, %c0_49, %c4_50] : memref<1x2x8x8xbf16, #tpu.memory_space<vmem>>, vector<1x1x8x4xbf16>
    %81 = vector.shape_cast %80 : vector<1x1x8x4xbf16> to vector<8x4xbf16>
    %82 = vector.shape_cast %79 : vector<8x4xbf16> to vector<1x1x8x4xbf16>
    tpu.vector_store %arg8[%c0_47, %c0_48, %c0_49, %c4_50], %82 {strides = array<i32>} : memref<1x2x8x8xbf16, #tpu.memory_space<vmem>>, vector<1x1x8x4xbf16>,
    %83 = vector.extract_strided_slice %10 {offsets = [0, 0], sizes = [8, 8], strides = [1, 1]} : vector<8x16xf32> to vector<8x8xf32>
    %84 = arith.truncf %83 : vector<8x8xf32> to vector<8x8xbf16>
    %c0_51 = arith.constant 0 : index
    %c0_52 = arith.constant 0 : index
    %c0_53 = arith.constant 0 : index
    %c0_54 = arith.constant 0 : index
    %85 = vector.load %arg9[%c0_51, %c0_52, %c0_53, %c0_54] : memref<1x2x8x8xbf16, #tpu.memory_space<vmem>>, vector<1x1x8x8xbf16>
    %86 = vector.shape_cast %85 : vector<1x1x8x8xbf16> to vector<8x8xbf16>
    %87 = vector.shape_cast %84 : vector<8x8xbf16> to vector<1x1x8x8xbf16>
    tpu.vector_store %arg9[%c0_51, %c0_52, %c0_53, %c0_54], %87 {strides = array<i32>} : memref<1x2x8x8xbf16, #tpu.memory_space<vmem>>, vector<1x1x8x8xbf16>,
    %88 = vector.extract_strided_slice %29 {offsets = [0, 4], sizes = [8, 4], strides = [1, 1]} : vector<8x8xf32> to vector<8x4xf32>
    %89 = arith.truncf %88 : vector<8x4xf32> to vector<8x4xbf16>
    %c0_55 = arith.constant 0 : index
    %c1_56 = arith.constant 1 : index
    %c0_57 = arith.constant 0 : index
    %c0_58 = arith.constant 0 : index
    %90 = vector.load %arg8[%c0_55, %c1_56, %c0_57, %c0_58] : memref<1x2x8x8xbf16, #tpu.memory_space<vmem>>, vector<1x1x8x4xbf16>
    %91 = vector.shape_cast %90 : vector<1x1x8x4xbf16> to vector<8x4xbf16>
    %92 = vector.shape_cast %89 : vector<8x4xbf16> to vector<1x1x8x4xbf16>
    tpu.vector_store %arg8[%c0_55, %c1_56, %c0_57, %c0_58], %92 {strides = array<i32>} : memref<1x2x8x8xbf16, #tpu.memory_space<vmem>>, vector<1x1x8x4xbf16>,
    %93 = vector.extract_strided_slice %32 {offsets = [0, 4], sizes = [8, 4], strides = [1, 1]} : vector<8x8xf32> to vector<8x4xf32>
    %94 = arith.truncf %93 : vector<8x4xf32> to vector<8x4xbf16>
    %c0_59 = arith.constant 0 : index
    %c1_60 = arith.constant 1 : index
    %c0_61 = arith.constant 0 : index
    %c4_62 = arith.constant 4 : index
    %95 = vector.load %arg8[%c0_59, %c1_60, %c0_61, %c4_62] : memref<1x2x8x8xbf16, #tpu.memory_space<vmem>>, vector<1x1x8x4xbf16>
    %96 = vector.shape_cast %95 : vector<1x1x8x4xbf16> to vector<8x4xbf16>
    %97 = vector.shape_cast %94 : vector<8x4xbf16> to vector<1x1x8x4xbf16>
    tpu.vector_store %arg8[%c0_59, %c1_60, %c0_61, %c4_62], %97 {strides = array<i32>} : memref<1x2x8x8xbf16, #tpu.memory_space<vmem>>, vector<1x1x8x4xbf16>,
    %98 = vector.extract_strided_slice %10 {offsets = [0, 8], sizes = [8, 8], strides = [1, 1]} : vector<8x16xf32> to vector<8x8xf32>
    %99 = arith.truncf %98 : vector<8x8xf32> to vector<8x8xbf16>
    %c0_63 = arith.constant 0 : index
    %c1_64 = arith.constant 1 : index
    %c0_65 = arith.constant 0 : index
    %c0_66 = arith.constant 0 : index
    %100 = vector.load %arg9[%c0_63, %c1_64, %c0_65, %c0_66] : memref<1x2x8x8xbf16, #tpu.memory_space<vmem>>, vector<1x1x8x8xbf16>
    %101 = vector.shape_cast %100 : vector<1x1x8x8xbf16> to vector<8x8xbf16>
    %102 = vector.shape_cast %99 : vector<8x8xbf16> to vector<1x1x8x8xbf16>
    tpu.vector_store %arg9[%c0_63, %c1_64, %c0_65, %c0_66], %102 {strides = array<i32>} : memref<1x2x8x8xbf16, #tpu.memory_space<vmem>>, vector<1x1x8x8xbf16>,
    return
  }
  func.func @transform_0(%arg0: i32) -> (i32, i32, i32) {
    %c0_i32 = arith.constant 0 : i32
    %c0_i32_0 = arith.constant 0 : i32
    %c0_i32_1 = arith.constant 0 : i32
    return %arg0, %c0_i32, %c0_i32_0 : i32, i32, i32
  }
  func.func @transform_1(%arg0: i32) -> (i32, i32) {
    %c0_i32 = arith.constant 0 : i32
    %c0_i32_0 = arith.constant 0 : i32
    %c0_i32_1 = arith.constant 0 : i32
    return %c0_i32, %c0_i32_0 : i32, i32
  }
  func.func @transform_2(%arg0: i32) -> (i32, i32) {
    %c0_i32 = arith.constant 0 : i32
    %c0_i32_0 = arith.constant 0 : i32
    %c0_i32_1 = arith.constant 0 : i32
    return %c0_i32, %c0_i32_0 : i32, i32
  }
  func.func @transform_3(%arg0: i32) -> (i32, i32) {
    %c0_i32 = arith.constant 0 : i32
    %c0_i32_0 = arith.constant 0 : i32
    %c0_i32_1 = arith.constant 0 : i32
    return %c0_i32, %c0_i32_0 : i32, i32
  }
  func.func @transform_4(%arg0: i32) -> (i32, i32) {
    %c0_i32 = arith.constant 0 : i32
    %c0_i32_0 = arith.constant 0 : i32
    %c0_i32_1 = arith.constant 0 : i32
    return %c0_i32, %c0_i32_0 : i32, i32
  }
  func.func @transform_5(%arg0: i32) -> (i32, i32) {
    %c0_i32 = arith.constant 0 : i32
    %c0_i32_0 = arith.constant 0 : i32
    %c0_i32_1 = arith.constant 0 : i32
    return %c0_i32, %c0_i32_0 : i32, i32
  }
  func.func @transform_6(%arg0: i32) -> (i32, i32, i32, i32) {
    %c0_i32 = arith.constant 0 : i32
    %c0_i32_0 = arith.constant 0 : i32
    %c0_i32_1 = arith.constant 0 : i32
    %c0_i32_2 = arith.constant 0 : i32
    return %arg0, %c0_i32, %c0_i32_0, %c0_i32_1 : i32, i32, i32, i32
  }
  func.func @transform_7(%arg0: i32) -> (i32, i32, i32, i32) {
    %c0_i32 = arith.constant 0 : i32
    %c0_i32_0 = arith.constant 0 : i32
    %c0_i32_1 = arith.constant 0 : i32
    %c0_i32_2 = arith.constant 0 : i32
    return %arg0, %c0_i32, %c0_i32_0, %c0_i32_1 : i32, i32, i32, i32
  }
  func.func @transform_8(%arg0: i32) -> (i32, i32, i32, i32) {
    %c0_i32 = arith.constant 0 : i32
    %c0_i32_0 = arith.constant 0 : i32
    %c0_i32_1 = arith.constant 0 : i32
    %c0_i32_2 = arith.constant 0 : i32
    return %arg0, %c0_i32, %c0_i32_0, %c0_i32_1 : i32, i32, i32, i32
  }
}

</mosaic_0001>

<llo_original>
// kernel: tpu_custom_call.1
$region0: #{tpu_custom_call.1}
  #allocation0 [shape = 'u32[]', space=smem, size = 0x4, offset = 0x4, fixed_abs, tag = 'smem constant byte address 0x4 - core index']
  #allocation1 [shape = 'u32[72,128]{1,0:T(1,128)}', space=vmem, size = 0x9000, scoped, tag = 'internal scratch']
  %s0 = inlined_call_operand.vmem [shape: f32[2,8,32], index: 0, kind: input, shape index: {}]
  %s1 = inlined_call_operand.vmem [shape: bf16[32,32], index: 1, kind: input, shape index: {}]
  %s2 = inlined_call_operand.vmem [shape: bf16[32,16], index: 2, kind: input, shape index: {}]
  %s3 = inlined_call_operand.vmem [shape: bf16[32,16], index: 3, kind: input, shape index: {}]
  %s4 = inlined_call_operand.vmem [shape: f32[8,4], index: 4, kind: input, shape index: {}]
  %s5 = inlined_call_operand.vmem [shape: f32[8,4], index: 5, kind: input, shape index: {}]
  %s6 = inlined_call_operand.hbm [shape: bf16[2,4,8,8], index: 6, kind: output, shape index: {0}]
  %s7 = inlined_call_operand.hbm [shape: bf16[2,2,8,8], index: 7, kind: output, shape index: {1}]
  %s8 = inlined_call_operand.hbm [shape: bf16[2,2,8,8], index: 8, kind: output, shape index: {2}]
  %9 = xla_tuple %s6, %s7, %s8
  %s10 = sld [smem:[#allocation0]]
  $region73: #{tpu_custom_call.1} parent=0
    _
  %s12 = ssub.s32 1, %s10
  %s13 = scalar_select 0, %s12, %s10
  $region1: #{tpu_custom_call.1} parent=0
    #allocation2 [shape = 'u8[16384]{0}', space=vmem, size = 0x4000, scoped, tag = 'output window, operand 0']
    #allocation3 [shape = 's32[2]{0}', space=sflag, size = 0x8, scoped, tag = 'scoped memory for tpu_custom_call.1']
    #allocation4 [shape = 'u8[8192]{0}', space=vmem, size = 0x2000, scoped, tag = 'output window, operand 1']
    #allocation5 [shape = 's32[2]{0}', space=sflag, size = 0x8, scoped, tag = 'scoped memory for tpu_custom_call.1']
    #allocation6 [shape = 'u8[8192]{0}', space=vmem, size = 0x2000, scoped, tag = 'output window, operand 2']
    %14 = vsyncpa [#allocation3], 0
    %s15 = scalar_lea.sflag [#allocation3], 1
    %16 = vsyncpa %s15, 0
    %17 = vsyncpa [#allocation5], 0
    %s18 = scalar_lea.sflag [#allocation5], 1
    %19 = vsyncpa %s18, 0
    loop: start=0, step=1, limit=4
    $region2: #{tpu_custom_call.1} parent=1 // loop_pre_header
      _
    $region3: #{tpu_custom_call.1} parent=1 // loop_header
      %s21 = sphi 0, %s25
      %p22 = scmp.ge.s32.totalorder %s21, 4
      %s31 = sphi 0, %s33
      %s34 = sphi 0, %s31
      %s35 = sphi 0, %s34
      %s51 = sphi 0, %s35
      %s55 = sphi 0, %s55
      %s57 = sphi 0, %s55
      %s58 = sphi 0, %s57
      %s72 = sphi 0, %s58
      %s76 = sphi 0, %s76
      %s78 = sphi 0, %s76
      %s79 = sphi 0, %s78
      %s93 = sphi 0, %s79
      %s97 = sphi 0, %s97
      %s99 = sphi 0, %s97
      %s100 = sphi 0, %s99
      %s114 = sphi 0, %s100
      %s118 = sphi 0, %s118
      %s120 = sphi 0, %s118
      %s121 = sphi 0, %s120
      %s135 = sphi 0, %s121
      %s139 = sphi 0, %s139
      %s141 = sphi 0, %s139
      %s142 = sphi 0, %s141
      %s156 = sphi 0, %s142
      %s162 = sphi 0, %s164
      %s165 = sphi 0, %s162
      %s166 = sphi 0, %s165
      %s182 = sphi 0, %s166
      %s188 = sphi 0, %s190
      %s191 = sphi 0, %s188
      %s192 = sphi 0, %s191
      %s208 = sphi 0, %s192
      %s214 = sphi 0, %s216
      %s217 = sphi 0, %s214
      %s218 = sphi 0, %s217
      %s234 = sphi 0, %s218
    $region4: #{tpu_custom_call.1} parent=1 // loop_header_branch
      %24 = sbr.rel (%p22) target = $region8
    $region5: #{tpu_custom_call.1} parent=1 // loop_body
      %s26 = ssub.s32 %s21, 1
      %s27 = ssub.s32 %s21, 2
      %s28 = sadd.s32 %s21, 1
      %s29 = ssub.s32 %s21, %s28
      %p30 = scmp.eq.s32.totalorder %s29, 0
      %s32 = sadd.s32 %s31, 1
      %s33 = scalar_select %p30, %s31, %s32
      %p36 = pneg %p30
      %p37 = scmp.eq.s32.totalorder %s21, 1
      %p38 = por %p36, %p37
      %p39 = scmp.ne.s32.totalorder %s31, %s34
      %p40 = scmp.eq.s32.totalorder %s21, 0
      %p41 = por %p39, %p40
      %p42 = scmp.ne.s32.totalorder %s31, %s34
      %p43 = scmp.eq.s32.totalorder %s26, 1
      %p44 = por %p42, %p43
      %p45 = scmp.ne.s32.totalorder %s34, %s35
      %p46 = scmp.eq.s32.totalorder %s26, 0
      %p47 = por %p45, %p46
      %p48 = scmp.ne.s32.totalorder %s34, %s35
      %p49 = scmp.eq.s32.totalorder %s27, 1
      %p50 = por %p48, %p49
      %p52 = scmp.ne.s32.totalorder %s35, %s51
      %p53 = scmp.eq.s32.totalorder %s27, 0
      %p54 = por %p52, %p53
      %s56 = sadd.s32 %s55, 1
      %p59 = scmp.eq.s32.totalorder %s21, 1
      %p60 = scmp.ne.s32.totalorder %s55, %s57
      %p61 = scmp.eq.s32.totalorder %s21, 0
      %p62 = por %p60, %p61
      %p63 = scmp.ne.s32.totalorder %s55, %s57
      %p64 = scmp.eq.s32.totalorder %s26, 1
      %p65 = por %p63, %p64
      %p66 = scmp.ne.s32.totalorder %s57, %s58
      %p67 = scmp.eq.s32.totalorder %s26, 0
      %p68 = por %p66, %p67
      %p69 = scmp.ne.s32.totalorder %s57, %s58
      %p70 = scmp.eq.s32.totalorder %s27, 1
      %p71 = por %p69, %p70
      %p73 = scmp.ne.s32.totalorder %s58, %s72
      %p74 = scmp.eq.s32.totalorder %s27, 0
      %p75 = por %p73, %p74
      %s77 = sadd.s32 %s76, 1
      %p80 = scmp.eq.s32.totalorder %s21, 1
      %p81 = scmp.ne.s32.totalorder %s76, %s78
      %p82 = scmp.eq.s32.totalorder %s21, 0
      %p83 = por %p81, %p82
      %p84 = scmp.ne.s32.totalorder %s76, %s78
      %p85 = scmp.eq.s32.totalorder %s26, 1
      %p86 = por %p84, %p85
      %p87 = scmp.ne.s32.totalorder %s78, %s79
      %p88 = scmp.eq.s32.totalorder %s26, 0
      %p89 = por %p87, %p88
      %p90 = scmp.ne.s32.totalorder %s78, %s79
      %p91 = scmp.eq.s32.totalorder %s27, 1
      %p92 = por %p90, %p91
      %p94 = scmp.ne.s32.totalorder %s79, %s93
      %p95 = scmp.eq.s32.totalorder %s27, 0
      %p96 = por %p94, %p95
      %s98 = sadd.s32 %s97, 1
      %p101 = scmp.eq.s32.totalorder %s21, 1
      %p102 = scmp.ne.s32.totalorder %s97, %s99
      %p103 = scmp.eq.s32.totalorder %s21, 0
      %p104 = por %p102, %p103
      %p105 = scmp.ne.s32.totalorder %s97, %s99
      %p106 = scmp.eq.s32.totalorder %s26, 1
      %p107 = por %p105, %p106
      %p108 = scmp.ne.s32.totalorder %s99, %s100
      %p109 = scmp.eq.s32.totalorder %s26, 0
      %p110 = por %p108, %p109
      %p111 = scmp.ne.s32.totalorder %s99, %s100
      %p112 = scmp.eq.s32.totalorder %s27, 1
      %p113 = por %p111, %p112
      %p115 = scmp.ne.s32.totalorder %s100, %s114
      %p116 = scmp.eq.s32.totalorder %s27, 0
      %p117 = por %p115, %p116
      %s119 = sadd.s32 %s118, 1
      %p122 = scmp.eq.s32.totalorder %s21, 1
      %p123 = scmp.ne.s32.totalorder %s118, %s120
      %p124 = scmp.eq.s32.totalorder %s21, 0
      %p125 = por %p123, %p124
      %p126 = scmp.ne.s32.totalorder %s118, %s120
      %p127 = scmp.eq.s32.totalorder %s26, 1
      %p128 = por %p126, %p127
      %p129 = scmp.ne.s32.totalorder %s120, %s121
      %p130 = scmp.eq.s32.totalorder %s26, 0
      %p131 = por %p129, %p130
      %p132 = scmp.ne.s32.totalorder %s120, %s121
      %p133 = scmp.eq.s32.totalorder %s27, 1
      %p134 = por %p132, %p133
      %p136 = scmp.ne.s32.totalorder %s121, %s135
      %p137 = scmp.eq.s32.totalorder %s27, 0
      %p138 = por %p136, %p137
      %s140 = sadd.s32 %s139, 1
      %p143 = scmp.eq.s32.totalorder %s21, 1
      %p144 = scmp.ne.s32.totalorder %s139, %s141
      %p145 = scmp.eq.s32.totalorder %s21, 0
      %p146 = por %p144, %p145
      %p147 = scmp.ne.s32.totalorder %s139, %s141
      %p148 = scmp.eq.s32.totalorder %s26, 1
      %p149 = por %p147, %p148
      %p150 = scmp.ne.s32.totalorder %s141, %s142
      %p151 = scmp.eq.s32.totalorder %s26, 0
      %p152 = por %p150, %p151
      %p153 = scmp.ne.s32.totalorder %s141, %s142
      %p154 = scmp.eq.s32.totalorder %s27, 1
      %p155 = por %p153, %p154
      %p157 = scmp.ne.s32.totalorder %s142, %s156
      %p158 = scmp.eq.s32.totalorder %s27, 0
      %p159 = por %p157, %p158
      %s160 = ssub.s32 %s21, %s28
      %p161 = scmp.eq.s32.totalorder %s160, 0
      %s163 = sadd.s32 %s162, 1
      %s164 = scalar_select %p161, %s162, %s163
      %p167 = pneg %p161
      %p168 = scmp.eq.s32.totalorder %s21, 1
      %p169 = por %p167, %p168
      %p170 = scmp.ne.s32.totalorder %s162, %s165
      %p171 = scmp.eq.s32.totalorder %s21, 0
      %p172 = por %p170, %p171
      %p173 = scmp.ne.s32.totalorder %s162, %s165
      %p174 = scmp.eq.s32.totalorder %s26, 1
      %p175 = por %p173, %p174
      %p176 = scmp.ne.s32.totalorder %s165, %s166
      %p177 = scmp.eq.s32.totalorder %s26, 0
      %p178 = por %p176, %p177
      %p179 = scmp.ne.s32.totalorder %s165, %s166
      %p180 = scmp.eq.s32.totalorder %s27, 1
      %p181 = por %p179, %p180
      %p183 = scmp.ne.s32.totalorder %s166, %s182
      %p184 = scmp.eq.s32.totalorder %s27, 0
      %p185 = por %p183, %p184
      %s186 = ssub.s32 %s21, %s28
      %p187 = scmp.eq.s32.totalorder %s186, 0
      %s189 = sadd.s32 %s188, 1
      %s190 = scalar_select %p187, %s188, %s189
      %p193 = pneg %p187
      %p194 = scmp.eq.s32.totalorder %s21, 1
      %p195 = por %p193, %p194
      %p196 = scmp.ne.s32.totalorder %s188, %s191
      %p197 = scmp.eq.s32.totalorder %s21, 0
      %p198 = por %p196, %p197
      %p199 = scmp.ne.s32.totalorder %s188, %s191
      %p200 = scmp.eq.s32.totalorder %s26, 1
      %p201 = por %p199, %p200
      %p202 = scmp.ne.s32.totalorder %s191, %s192
      %p203 = scmp.eq.s32.totalorder %s26, 0
      %p204 = por %p202, %p203
      %p205 = scmp.ne.s32.totalorder %s191, %s192
      %p206 = scmp.eq.s32.totalorder %s27, 1
      %p207 = por %p205, %p206
      %p209 = scmp.ne.s32.totalorder %s192, %s208
      %p210 = scmp.eq.s32.totalorder %s27, 0
      %p211 = por %p209, %p210
      %s212 = ssub.s32 %s21, %s28
      %p213 = scmp.eq.s32.totalorder %s212, 0
      %s215 = sadd.s32 %s214, 1
      %s216 = scalar_select %p213, %s214, %s215
      %p219 = pneg %p213
      %p220 = scmp.eq.s32.totalorder %s21, 1
      %p221 = por %p219, %p220
      %p222 = scmp.ne.s32.totalorder %s214, %s217
      %p223 = scmp.eq.s32.totalorder %s21, 0
      %p224 = por %p222, %p223
      %p225 = scmp.ne.s32.totalorder %s214, %s217
      %p226 = scmp.eq.s32.totalorder %s26, 1
      %p227 = por %p225, %p226
      %p228 = scmp.ne.s32.totalorder %s217, %s218
      %p229 = scmp.eq.s32.totalorder %s26, 0
      %p230 = por %p228, %p229
      %p231 = scmp.ne.s32.totalorder %s217, %s218
      %p232 = scmp.eq.s32.totalorder %s27, 1
      %p233 = por %p231, %p232
      %p235 = scmp.ne.s32.totalorder %s218, %s234
      %p236 = scmp.eq.s32.totalorder %s27, 0
      %p237 = por %p235, %p236
      %p238 = scmp.le.s32.totalorder 1, %s21
      %p239 = scmp.lt.s32.totalorder %s21, 3
      %p240 = pnand %p238, %p239
      %p241 = pneg %p240
      // Predicated region
      $region9: #{tpu_custom_call.1} parent=5 // pred_check
        _
      $region10: #{tpu_custom_call.1} parent=5 // pred_check_branch
        %243 = sbr.rel (%p240) target = $region12
      $region11: #{tpu_custom_call.1} parent=5 // pred_region
        %s244 = ssub.s32 %s21, 1
        // Predicated region
        $region13: #{tpu_custom_call.1} parent=11 // pred_check
          %p245 = pneg %p68
        $region14: #{tpu_custom_call.1} parent=11 // pred_check_branch
          %247 = sbr.rel (%p245) target = $region16
        $region15: #{tpu_custom_call.1} parent=11 // pred_region
          _
        $region16: #{tpu_custom_call.1} parent=11 // pred_fallthru
          _
        // Predicated region
        $region17: #{tpu_custom_call.1} parent=11 // pred_check
          %p248 = pneg %p89
        $region18: #{tpu_custom_call.1} parent=11 // pred_check_branch
          %250 = sbr.rel (%p248) target = $region20
        $region19: #{tpu_custom_call.1} parent=11 // pred_region
          _
        $region20: #{tpu_custom_call.1} parent=11 // pred_fallthru
          _
        // Predicated region
        $region21: #{tpu_custom_call.1} parent=11 // pred_check
          %p251 = pneg %p110
        $region22: #{tpu_custom_call.1} parent=11 // pred_check_branch
          %253 = sbr.rel (%p251) target = $region24
        $region23: #{tpu_custom_call.1} parent=11 // pred_region
          _
        $region24: #{tpu_custom_call.1} parent=11 // pred_fallthru
          _
        // Predicated region
        $region25: #{tpu_custom_call.1} parent=11 // pred_check
          %p254 = pneg %p131
        $region26: #{tpu_custom_call.1} parent=11 // pred_check_branch
          %256 = sbr.rel (%p254) target = $region28
        $region27: #{tpu_custom_call.1} parent=11 // pred_region
          _
        $region28: #{tpu_custom_call.1} parent=11 // pred_fallthru
          _
        // Predicated region
        $region29: #{tpu_custom_call.1} parent=11 // pred_check
          %p257 = pneg %p152
        $region30: #{tpu_custom_call.1} parent=11 // pred_check_branch
          %259 = sbr.rel (%p257) target = $region32
        $region31: #{tpu_custom_call.1} parent=11 // pred_region
          _
        $region32: #{tpu_custom_call.1} parent=11 // pred_fallthru
          _
      $region12: #{tpu_custom_call.1} parent=5 // pred_fallthru
        _
      %p260 = scmp.lt.s32.totalorder %s21, 2
      // Predicated region
      $region33: #{tpu_custom_call.1} parent=5 // pred_check
        %p261 = pneg %p260
      $region34: #{tpu_custom_call.1} parent=5 // pred_check_branch
        %263 = sbr.rel (%p261) target = $region36
      $region35: #{tpu_custom_call.1} parent=5 // pred_region
        // Predicated region
        $region37: #{tpu_custom_call.1} parent=35 // pred_check
          %p264 = pneg %p41
        $region38: #{tpu_custom_call.1} parent=35 // pred_check_branch
          %266 = sbr.rel (%p264) target = $region40
        $region39: #{tpu_custom_call.1} parent=35 // pred_region
          %p267 = scmp.lt.s32.totalorder %s21, 1
          %s268 = scalar_select %p267, %s21, 1
          %s269 = smul.addr %s268, 8
          %s270 = scalar_lea.vmem %s0, %s269
        $region40: #{tpu_custom_call.1} parent=35 // pred_fallthru
          _
      $region36: #{tpu_custom_call.1} parent=5 // pred_fallthru
        _
      %p271 = scmp.le.s32.totalorder 1, %s21
      %p272 = scmp.lt.s32.totalorder %s21, 3
      %p273 = pnand %p271, %p272
      %p274 = pneg %p273
      // Predicated region
      $region41: #{tpu_custom_call.1} parent=5 // pred_check
        _
      $region42: #{tpu_custom_call.1} parent=5 // pred_check_branch
        %276 = sbr.rel (%p273) target = $region44
      $region43: #{tpu_custom_call.1} parent=5 // pred_region
        %s277 = ssub.s32 %s21, 1
        %p278 = scmp.lt.s32.totalorder %s26, 1
        %s279 = scalar_select %p278, %s26, 1
        %s280 = smul.addr %s279, 8
        %s281 = scalar_lea.vmem %s0, %s280
        %p282 = pneg %p47
        %p283 = pneg %p44
        %p284 = pneg %p68
        %p285 = pneg %p65
        %p286 = pneg %p89
        %p287 = pneg %p86
        %p288 = pneg %p110
        %p289 = pneg %p107
        %p290 = pneg %p131
        %p291 = pneg %p128
        %p292 = pneg %p152
        %p293 = pneg %p149
        %p294 = pneg %p178
        %p295 = pneg %p175
        %s296 = sand.u32 %s165, 1
        %s297 = scalar_lea.sflag [#allocation3], %s296
        %s298 = sand.u32 %s165, 1
        %s299 = smul.addr %s298, 16
        %s300 = scalar_lea.vmem [#allocation2], %s299
        %p301 = pneg %p204
        %p302 = pneg %p201
        %s303 = sand.u32 %s26, 1
        %s304 = scalar_lea.sflag [#allocation5], %s303
        %s305 = sand.u32 %s191, 1
        %s306 = smul.addr %s305, 8
        %s307 = scalar_lea.vmem [#allocation4], %s306
        %p308 = pneg %p230
        %p309 = pneg %p227
        %s310 = sand.u32 %s26, 1
        %s311 = scalar_lea.sflag [#allocation5], %s310
        %s312 = sand.u32 %s217, 1
        %s313 = smul.addr %s312, 8
        %s314 = scalar_lea.vmem [#allocation6], %s313
        %p315 = scmp.lt.s32.totalorder %s26, 1
        %s316 = scalar_select %p315, %s26, 1
        %s317 = smul.addr %s316, 8
        %s318 = scalar_lea.vmem %s0, %s317
        %v320 = vld [vmem:[%s318] sm:$0xff]
        %v321 = vpack.c.bf16 %v320, %v320
        %v322 = vld [vmem:[%s1] sm:$0xf]
        %v323 = vld [vmem:[%s1 + $0x4] sm:$0xf]
        %v324 = vld [vmem:[%s1 + $0x8] sm:$0xf]
        %v325 = vld [vmem:[%s1 + $0xc] sm:$0xf]
        %v330 = vunpack.c.l.b16 %v322
        %v331 = vunpack.c.l.b16 %v323
        %v332 = vunpack.c.l.b16 %v324
        %v333 = vunpack.c.l.b16 %v325
        %v334 = vpack.c.b16 %v331, %v330
        %v335 = vpack.c.b16 %v333, %v332
        %vm338 = vcmask 261120
        %v340 = vsel %vm338, %v321, 0
        %342 = vmatpush.bf16.msra.mxu0 0
        %343 = vmatpush.bf16.msra.mxu0 0
        %344 = vmatpush.bf16.msra.mxu0 0
        %345 = vmatpush.bf16.msra.mxu0 0
        %346 = vmatpush.bf16.msra.mxu0 0
        %347 = vmatpush.bf16.msra.mxu0 0
        %348 = vmatpush.bf16.msra.mxu0 %v335
        %349 = vmatpush.bf16.msra.mxu0 %v334
        %350 = vmatmul.bf16.gmra.mxu0 %v340
        %v351 = vpop.f32.mrf.mxu0
        %v352 = vadd.f32 0.0, %v351
        %v353 = vpop.f32.mrf.mxu0
        %354 = vdwg.mxu0
        %v355 = vmul.f32 %v352, 0.35355338
        %v356 = vld [vmem:[%s2] sm:$0xf]
        %v357 = vld [vmem:[%s2 + $0x4] sm:$0xf]
        %v358 = vld [vmem:[%s2 + $0x8] sm:$0xf]
        %v359 = vld [vmem:[%s2 + $0xc] sm:$0xf]
        %v364 = vunpack.c.l.b16 %v356
        %v365 = vunpack.c.l.b16 %v357
        %v366 = vunpack.c.l.b16 %v358
        %v367 = vunpack.c.l.b16 %v359
        %v368 = vpack.c.b16 %v365, %v364
        %v369 = vpack.c.b16 %v367, %v366
        %372 = vmatpush.bf16.msra.mxu0 0
        %373 = vmatpush.bf16.msra.mxu0 0
        %374 = vmatpush.bf16.msra.mxu0 0
        %375 = vmatpush.bf16.msra.mxu0 0
        %376 = vmatpush.bf16.msra.mxu0 0
        %377 = vmatpush.bf16.msra.mxu0 0
        %378 = vmatpush.bf16.msra.mxu0 %v369
        %379 = vmatpush.bf16.msra.mxu0 %v368
        %380 = vmatmul.bf16.gmra.mxu0 %v340
        %v381 = vpop.f32.mrf.mxu0
        %v382 = vadd.f32 0.0, %v381
        %v383 = vpop.f32.mrf.mxu0
        %384 = vdwg.mxu0
        %v385 = vld [vmem:[%s3] sm:$0xf]
        %v386 = vld [vmem:[%s3 + $0x4] sm:$0xf]
        %v387 = vld [vmem:[%s3 + $0x8] sm:$0xf]
        %v388 = vld [vmem:[%s3 + $0xc] sm:$0xf]
        %v393 = vunpack.c.l.b16 %v385
        %v394 = vunpack.c.l.b16 %v386
        %v395 = vunpack.c.l.b16 %v387
        %v396 = vunpack.c.l.b16 %v388
        %v397 = vpack.c.b16 %v394, %v393
        %v398 = vpack.c.b16 %v396, %v395
        %401 = vmatpush.bf16.msra.mxu0 0
        %402 = vmatpush.bf16.msra.mxu0 0
        %403 = vmatpush.bf16.msra.mxu0 0
        %404 = vmatpush.bf16.msra.mxu0 0
        %405 = vmatpush.bf16.msra.mxu0 0
        %406 = vmatpush.bf16.msra.mxu0 0
        %407 = vmatpush.bf16.msra.mxu0 %v398
        %408 = vmatpush.bf16.msra.mxu0 %v397
        %409 = vmatmul.bf16.gmra.mxu0 %v340
        %v410 = vpop.f32.mrf.mxu0
        %v411 = vadd.f32 0.0, %v410
        %v412 = vpop.f32.mrf.mxu0
        %413 = vdwg.mxu0
        %v414 = vld [vmem:[%s4] sm:$0xff]
        %v415 = vld [vmem:[%s5] sm:$0xff]
        %417 = vrot.lane.b32.xlu0 %v414, 4
        %v418 = vpop.permute.xlu0 %417
        %420 = vrot.lane.b32.xlu0 %v414, 8
        %v421 = vpop.permute.xlu0 %420
        %423 = vrot.lane.b32.xlu0 %v414, 12
        %v424 = vpop.permute.xlu0 %423
        %vm426 = vcmask 31744
        %v427 = vsel %vm426, %v414, %v418
        %vm428 = vcmask 64512
        %v429 = vsel %vm428, %v427, %v421
        %vm430 = vcmask 97280
        %v431 = vsel %vm430, %v429, %v424
        %433 = vrot.lane.b32.xlu0 %v415, 4
        %v434 = vpop.permute.xlu0 %433
        %436 = vrot.lane.b32.xlu0 %v415, 8
        %v437 = vpop.permute.xlu0 %436
        %439 = vrot.lane.b32.xlu0 %v415, 12
        %v440 = vpop.permute.xlu0 %439
        %v442 = vsel %vm426, %v415, %v434
        %v443 = vsel %vm428, %v442, %v437
        %v444 = vsel %vm430, %v443, %v440
        %v445 = vmul.f32 %v355, %v431
        %447 = vrot.lane.b32.xlu0 %v444, 16
        %v448 = vpop.permute.xlu0 %447
        %v450 = vmul.f32 %v355, %v448
        %452 = vrot.lane.b32.xlu0 %v450, 112
        %v453 = vpop.permute.xlu0 %452
        %v455 = vsub.f32 %v445, %v453
        %v456 = vmul.f32 %v355, %v444
        %458 = vrot.lane.b32.xlu0 %v431, 16
        %v459 = vpop.permute.xlu0 %458
        %v461 = vmul.f32 %v355, %v459
        %463 = vrot.lane.b32.xlu0 %v461, 112
        %v464 = vpop.permute.xlu0 %463
        %v466 = vadd.f32 %v456, %v464
        %v467 = vmul.f32 %v382, %v427
        %469 = vrot.lane.b32.xlu0 %v442, 8
        %v470 = vpop.permute.xlu0 %469
        %v472 = vmul.f32 %v382, %v470
        %474 = vrot.lane.b32.xlu0 %v472, 120
        %v475 = vpop.permute.xlu0 %474
        %v477 = vsub.f32 %v467, %v475
        %v478 = vmul.f32 %v382, %v442
        %480 = vrot.lane.b32.xlu0 %v427, 8
        %v481 = vpop.permute.xlu0 %480
        %v483 = vmul.f32 %v382, %v481
        %485 = vrot.lane.b32.xlu0 %v483, 120
        %v486 = vpop.permute.xlu0 %485
        %v488 = vadd.f32 %v478, %v486
        %v489 = vpack.c.bf16 %v455, %v455
        %vm490 = vcmask 27648
        %491 = vst.msk [vmem:[%s300] sm:$0xf] %vm490, %v489
        %v492 = vpack.c.bf16 %v466, %v466
        %494 = vrot.lane.b32.xlu0 %v492, 4
        %v495 = vpop.permute.xlu0 %494
        %vm497 = vcmask 60448
        %498 = vst.msk [vmem:[%s300] sm:$0xf] %vm497, %v495
        %500 = vrot.lane.b32.xlu0 %v489, 124
        %v501 = vpop.permute.xlu0 %500
        %s503 = scalar_lea.vmem %s300, 4 [#allocation2]
        %504 = vst.msk [vmem:[%s503] sm:$0xf] %vm490, %v501
        %505 = vst.msk [vmem:[%s503] sm:$0xf] %vm497, %v492
        %506 = vrot.lane.b32.xlu0 %v489, 120
        %v507 = vpop.permute.xlu0 %506
        %s509 = scalar_lea.vmem %s300, 8 [#allocation2]
        %510 = vst.msk [vmem:[%s509] sm:$0xf] %vm490, %v507
        %511 = vrot.lane.b32.xlu0 %v492, 124
        %v512 = vpop.permute.xlu0 %511
        %514 = vst.msk [vmem:[%s509] sm:$0xf] %vm497, %v512
        %515 = vrot.lane.b32.xlu0 %v489, 116
        %v516 = vpop.permute.xlu0 %515
        %s518 = scalar_lea.vmem %s300, 12 [#allocation2]
        %519 = vst.msk [vmem:[%s518] sm:$0xf] %vm490, %v516
        %520 = vrot.lane.b32.xlu0 %v492, 120
        %v521 = vpop.permute.xlu0 %520
        %523 = vst.msk [vmem:[%s518] sm:$0xf] %vm497, %v521
        %v524 = vpack.c.bf16 %v477, %v477
        %525 = vst.msk [vmem:[%s307] sm:$0xf] %vm490, %v524
        %v526 = vpack.c.bf16 %v488, %v488
        %528 = vrot.lane.b32.xlu0 %v526, 4
        %v529 = vpop.permute.xlu0 %528
        %531 = vst.msk [vmem:[%s307] sm:$0xf] %vm497, %v529
        %v532 = vpack.c.bf16 %v411, %v411
        %vm533 = vcmask 60416
        %534 = vst.msk [vmem:[%s314] sm:$0xf] %vm533, %v532
        %536 = vrot.lane.b32.xlu0 %v524, 124
        %v537 = vpop.permute.xlu0 %536
        %s539 = scalar_lea.vmem %s307, 4 [#allocation4]
        %540 = vst.msk [vmem:[%s539] sm:$0xf] %vm490, %v537
        %541 = vst.msk [vmem:[%s539] sm:$0xf] %vm497, %v526
        %543 = vrot.lane.b32.xlu0 %v532, 120
        %v544 = vpop.permute.xlu0 %543
        %s546 = scalar_lea.vmem %s314, 4 [#allocation6]
        %547 = vst.msk [vmem:[%s546] sm:$0xf] %vm533, %v544
        %s548 = sand.u32 %s165, 1
        %s549 = scalar_lea.sflag [#allocation3], %s548
        %s550 = sand.u32 %s165, 1
        %s551 = smul.addr %s550, 16
        %s552 = scalar_lea.vmem [#allocation2], %s551
        %s553 = sand.u32 %s26, 1
        %s554 = scalar_lea.sflag [#allocation5], %s553
        %s555 = sand.u32 %s191, 1
        %s556 = smul.addr %s555, 8
        %s557 = scalar_lea.vmem [#allocation4], %s556
        %s558 = sand.u32 %s26, 1
        %s559 = scalar_lea.sflag [#allocation5], %s558
        %s560 = sand.u32 %s217, 1
        %s561 = smul.addr %s560, 8
        %s562 = scalar_lea.vmem [#allocation6], %s561
        // Predicated region
        $region45: #{tpu_custom_call.1} parent=43 // pred_check
          %p563 = pneg %p175
        $region46: #{tpu_custom_call.1} parent=43 // pred_check_branch
          %565 = sbr.rel (%p563) target = $region48
        $region47: #{tpu_custom_call.1} parent=43 // pred_region
          %567 = vsyncadd %s549, 0
          %s568 = smul.addr %s26, 4
          %s569 = smul.addr %s568, 4
          %s570 = scalar_lea.hbm %s6, %s569
          %s571 = sshll.u32 %s552, 4
          %s572 = int_to_ptr.vmem [resolvable:$true] %s571
          %s573 = sshll.u32 %s570, 4
          %s574 = int_to_ptr.hbm [resolvable:$true] %s573
          %579 = dma.vmem_to_hbm [thread:$0]  %s572, 256, %s574, %s549, 64, 64, 4
        $region48: #{tpu_custom_call.1} parent=43 // pred_fallthru
          _
        // Predicated region
        $region49: #{tpu_custom_call.1} parent=43 // pred_check
          %p580 = pneg %p201
        $region50: #{tpu_custom_call.1} parent=43 // pred_check_branch
          %582 = sbr.rel (%p580) target = $region52
        $region51: #{tpu_custom_call.1} parent=43 // pred_region
          %584 = vsyncadd %s554, 0
          %s585 = smul.addr %s26, 2
          %s586 = smul.addr %s585, 4
          %s587 = scalar_lea.hbm %s7, %s586
          %s588 = sshll.u32 %s557, 4
          %s589 = int_to_ptr.vmem [resolvable:$true] %s588
          %s590 = sshll.u32 %s587, 4
          %s591 = int_to_ptr.hbm [resolvable:$true] %s590
          %596 = dma.vmem_to_hbm [thread:$0]  %s589, 128, %s591, %s554, 64, 64, 4
        $region52: #{tpu_custom_call.1} parent=43 // pred_fallthru
          _
        // Predicated region
        $region53: #{tpu_custom_call.1} parent=43 // pred_check
          %p597 = pneg %p227
        $region54: #{tpu_custom_call.1} parent=43 // pred_check_branch
          %599 = sbr.rel (%p597) target = $region56
        $region55: #{tpu_custom_call.1} parent=43 // pred_region
          %601 = vsyncadd %s559, 0
          %s602 = smul.addr %s26, 2
          %s603 = smul.addr %s602, 4
          %s604 = scalar_lea.hbm %s8, %s603
          %s605 = sshll.u32 %s562, 4
          %s606 = int_to_ptr.vmem [resolvable:$true] %s605
          %s607 = sshll.u32 %s604, 4
          %s608 = int_to_ptr.hbm [resolvable:$true] %s607
          %613 = dma.vmem_to_hbm [thread:$0]  %s606, 128, %s608, %s559, 64, 64, 4
        $region56: #{tpu_custom_call.1} parent=43 // pred_fallthru
          _
      $region44: #{tpu_custom_call.1} parent=5 // pred_fallthru
        _
      %p614 = scmp.le.s32.totalorder 2, %s21
      // Predicated region
      $region57: #{tpu_custom_call.1} parent=5 // pred_check
        %p615 = pneg %p614
      $region58: #{tpu_custom_call.1} parent=5 // pred_check_branch
        %617 = sbr.rel (%p615) target = $region60
      $region59: #{tpu_custom_call.1} parent=5 // pred_region
        %s618 = ssub.s32 %s21, 2
        // Predicated region
        $region61: #{tpu_custom_call.1} parent=59 // pred_check
          %p619 = pneg %p181
        $region62: #{tpu_custom_call.1} parent=59 // pred_check_branch
          %621 = sbr.rel (%p619) target = $region64
        $region63: #{tpu_custom_call.1} parent=59 // pred_region
          %s622 = sand.u32 %s166, 1
          %s623 = scalar_lea.sflag [#allocation3], %s622
          %s624 = sand.u32 %s166, 1
          %s625 = smul.addr %s624, 16
          %s626 = scalar_lea.vmem [#allocation2], %s625
          %628 = dma.done %s623, 256
        $region64: #{tpu_custom_call.1} parent=59 // pred_fallthru
          _
        // Predicated region
        $region65: #{tpu_custom_call.1} parent=59 // pred_check
          %p629 = pneg %p207
        $region66: #{tpu_custom_call.1} parent=59 // pred_check_branch
          %631 = sbr.rel (%p629) target = $region68
        $region67: #{tpu_custom_call.1} parent=59 // pred_region
          %s632 = sand.u32 %s27, 1
          %s633 = scalar_lea.sflag [#allocation5], %s632
          %s634 = sand.u32 %s192, 1
          %s635 = smul.addr %s634, 8
          %s636 = scalar_lea.vmem [#allocation4], %s635
          %638 = dma.done %s633, 128
        $region68: #{tpu_custom_call.1} parent=59 // pred_fallthru
          _
        // Predicated region
        $region69: #{tpu_custom_call.1} parent=59 // pred_check
          %p639 = pneg %p233
        $region70: #{tpu_custom_call.1} parent=59 // pred_check_branch
          %641 = sbr.rel (%p639) target = $region72
        $region71: #{tpu_custom_call.1} parent=59 // pred_region
          %s642 = sand.u32 %s27, 1
          %s643 = scalar_lea.sflag [#allocation5], %s642
          %s644 = sand.u32 %s218, 1
          %s645 = smul.addr %s644, 8
          %s646 = scalar_lea.vmem [#allocation6], %s645
          %648 = dma.done %s643, 128
        $region72: #{tpu_custom_call.1} parent=59 // pred_fallthru
          _
      $region60: #{tpu_custom_call.1} parent=5 // pred_fallthru
        _
    $region6: #{tpu_custom_call.1} parent=1 // loop_footer
      %s25 = sadd.s32 1, %s21
    $region7: #{tpu_custom_call.1} parent=1 // loop_footer_branch
      %20 = sbr.rel target = $region3
    $region8: #{tpu_custom_call.1} parent=1 // loop_exit
      _
    %649 = vsyncpa [#allocation3], 1
    %s650 = scalar_lea.sflag [#allocation3], 1
    %651 = vsyncpa %s650, 1
    %652 = vsyncpa [#allocation5], 1
    %s653 = scalar_lea.sflag [#allocation5], 1
    %654 = vsyncpa %s653, 1

</llo_original>
